<compile_context>
chip_gen: v7x
topology: tpu7x:2x2x1
jax: 0.10.0
libtpu: 0.0.40
codegen_flags: <defaults>
</compile_context>

<pallas_src>
import functools

import jax
import jax.numpy as jnp
from jax.experimental import pallas as pl
from jax.experimental.pallas import tpu as pltpu


def _link_predictor_kernel(xi_ref, xj_ref,
                           w0_ref, b0_ref,
                           w1_ref, b1_ref,
                           w2_ref, b2_ref,
                           out_ref):
    # Feature-major: refs are [IN, TE] / [H, TE]; edges on the lane axis.
    x = xi_ref[...] * xj_ref[...]                                       # [IN, TE] bf16

    # Layer 0: h = relu(W0 @ X + b0).  bf16 x bf16 MXU matmul, f32 accumulate.
    h = jnp.dot(w0_ref[...], x, preferred_element_type=jnp.float32)    # [H, TE] f32
    h = jnp.maximum(h + b0_ref[...], 0.0)
    # TODO(synk): F.dropout(training=True) not implemented; eval mode => identity.

    # Layer 1: h1 = relu(W1 @ h + b1).
    h1 = jnp.dot(w1_ref[...], h.astype(w1_ref.dtype),
                 preferred_element_type=jnp.float32)                   # [H, TE] f32
    h1 = jnp.maximum(h1 + b1_ref[...], 0.0)

    # Final layer: W2 @ h1 + b2, then sigmoid.
    if out_ref.shape[0] == 1:
        # OUT == 1: sublane reduce (XLU) instead of an M=1 MXU matmul.
        y = jnp.sum(h1 * w2_ref[...], axis=0, keepdims=True) + b2_ref[...]   # [1, TE]
    else:
        y = jnp.dot(w2_ref[...], h1.astype(w2_ref.dtype),
                    preferred_element_type=jnp.float32) + b2_ref[...]        # [OUT, TE]

    # sigmoid(y) == 0.5*tanh(0.5*y) + 0.5 : one EUP op per vreg instead of exp+recip.
    out_ref[...] = (0.5 * jnp.tanh(0.5 * y) + 0.5).astype(out_ref.dtype)


def _round_up(n, m):
    return ((n + m - 1) // m) * m


@functools.partial(jax.jit, static_argnames=("block_e",))
def link_predictor(x_i, x_j, params, *, block_e=16384):
    """params = (w0, b0, w1, b1, w2, b2) with torch Linear convention
    w: [out_features, in_features], b: [out_features]."""
    w0, b0, w1, b1, w2, b2 = params
    E, IN = x_i.shape
    H = w0.shape[0]
    OUT = w2.shape[0]

    LANE = 128
    # Edge-axis tiling: lane-rounded, minimal padding, >=2 tiles when possible
    # so v7x's two TensorCores both get work off the "parallel" grid axis.
    e_lane = max(_round_up(E, LANE), LANE)
    num_tiles = max(-(-e_lane // block_e), 1)
    if e_lane >= 2 * LANE:
        num_tiles = max(num_tiles, 2)
    tile = _round_up(-(-e_lane // num_tiles), LANE)
    e_pad = tile * num_tiles

    cdt = jnp.bfloat16
    # Feature-major (transposed) inputs: [IN, e_pad] bf16, edges on lanes.
    xi_t = jnp.pad(x_i.astype(cdt).T, ((0, 0), (0, e_pad - E)))
    xj_t = jnp.pad(x_j.astype(cdt).T, ((0, 0), (0, e_pad - E)))

    # Weights stay in native torch [out, in] layout; biases as [out, 1] columns
    # (lane-broadcast against [out, TE] activations).
    w0b = w0.astype(cdt)                                   # [H, IN]
    w1b = w1.astype(cdt)                                   # [H, H]
    b0c = b0.reshape(H, 1).astype(jnp.float32)
    b1c = b1.reshape(H, 1).astype(jnp.float32)
    b2c = b2.reshape(OUT, 1).astype(jnp.float32)
    if OUT == 1:
        w2_arg = w2.T.astype(jnp.float32)                  # [H, 1] column for sublane reduce
        w2_spec = pl.BlockSpec((H, 1), lambda i: (0, 0))
    else:
        w2_arg = w2.astype(cdt)                            # [OUT, H] for MXU dot
        w2_spec = pl.BlockSpec((OUT, H), lambda i: (0, 0))

    grid = (e_pad // tile,)
    full = lambda i: (0, 0)   # weights/biases: same (only) block every grid step

    out = pl.pallas_call(
        _link_predictor_kernel,
        out_shape=jax.ShapeDtypeStruct((OUT, e_pad), x_i.dtype),
        grid_spec=pltpu.PrefetchScalarGridSpec(
            num_scalar_prefetch=0,
            grid=grid,
            in_specs=[
                pl.BlockSpec((IN, tile), lambda i: (0, i)),   # x_i^T tile (bf16)
                pl.BlockSpec((IN, tile), lambda i: (0, i)),   # x_j^T tile (bf16)
                pl.BlockSpec((H, IN), full),                  # w0 (bf16)
                pl.BlockSpec((H, 1), full),                   # b0 column
                pl.BlockSpec((H, H), full),                   # w1 (bf16)
                pl.BlockSpec((H, 1), full),                   # b1 column
                w2_spec,                                      # w2 (column or [OUT,H])
                pl.BlockSpec((OUT, 1), full),                 # b2 column
            ],
            # Lane-dense output slab: [OUT, tile] per step, unmasked stores.
            out_specs=pl.BlockSpec((OUT, tile), lambda i: (0, i)),
        ),
        compiler_params=pltpu.CompilerParams(
            dimension_semantics=("parallel",),
            vmem_limit_bytes=32 * 1024 * 1024,
        ),
    )(xi_t, xj_t, w0b, b0c, w1b, b1c, w2_arg, b2c)

    # Back to PyTorch layout: [E, OUT].
    return out[:, :E].T


def _reference(x_i, x_j, params):
    w0, b0, w1, b1, w2, b2 = params
    x = x_i * x_j
    x = jnp.maximum(x @ w0.T + b0, 0.0)
    x = jnp.maximum(x @ w1.T + b1, 0.0)
    x = x @ w2.T + b2
    return jax.nn.sigmoid(x)


if __name__ == "__main__":
    # Small deterministic config: num_layers=3, in=32, hidden=32, out=1.
    IN, H, OUT = 32, 32, 1

    key = jax.random.PRNGKey(0)
    k = jax.random.split(key, 10)

    # Deterministic parameter init (torch Linear shapes: w [out, in], b [out]).
    def init_linear(kw, kb, fan_in, fan_out):
        bound = 1.0 / jnp.sqrt(fan_in)
        w = jax.random.uniform(kw, (fan_out, fan_in), jnp.float32, -bound, bound)
        b = jax.random.uniform(kb, (fan_out,), jnp.float32, -bound, bound)
        return w, b

    w0, b0 = init_linear(k[2], k[3], IN, H)
    w1, b1 = init_linear(k[4], k[5], H, H)
    w2, b2 = init_linear(k[6], k[7], H, OUT)
    params = (w0, b0, w1, b1, w2, b2)

    # Case 1: small, lane-aligned edge count (2 grid steps of 128).
    E1 = 256
    x_i = jax.random.normal(k[0], (E1, IN), dtype=jnp.float32)
    x_j = jax.random.normal(k[1], (E1, IN), dtype=jnp.float32)
    out1 = jax.block_until_ready(link_predictor(x_i, x_j, params))
    ref1 = _reference(x_i, x_j, params)
    assert out1.shape == (E1, OUT)
    assert jnp.allclose(out1, ref1, atol=2e-2, rtol=2e-2), "mismatch vs. reference (E=256)"

    # Case 2: edge count not a lane/tile multiple (exercises padding + multi-step grid).
    E2 = 1000
    x_i2 = jax.random.normal(k[8], (E2, IN), dtype=jnp.float32)
    x_j2 = jax.random.normal(k[9], (E2, IN), dtype=jnp.float32)
    out2 = jax.block_until_ready(link_predictor(x_i2, x_j2, params, block_e=256))
    ref2 = _reference(x_i2, x_j2, params)
    assert out2.shape == (E2, OUT)
    assert jnp.allclose(out2, ref2, atol=2e-2, rtol=2e-2), "mismatch vs. reference (E=1000)"

    print("KERNEL_OK")
</pallas_src>

<mosaic_0001>
module attributes {stable_mosaic.version = 11 : i64} {
  func.func @_link_predictor_kernel(%arg0: i32, %arg1: memref<32x128xbf16, #tpu.memory_space<vmem>>, %arg2: memref<32x128xbf16, #tpu.memory_space<vmem>>, %arg3: memref<32x32xbf16, #tpu.memory_space<vmem>>, %arg4: memref<32x1xf32, #tpu.memory_space<vmem>>, %arg5: memref<32x32xbf16, #tpu.memory_space<vmem>>, %arg6: memref<32x1xf32, #tpu.memory_space<vmem>>, %arg7: memref<32x1xf32, #tpu.memory_space<vmem>>, %arg8: memref<1x1xf32, #tpu.memory_space<vmem>>, %arg9: memref<1x128xf32, #tpu.memory_space<vmem>>) attributes {dimension_semantics = [#tpu.dimension_semantics<parallel>], iteration_bounds = array<i64: 2>, scalar_prefetch = 0 : i64, scratch_operands = 0 : i64, tpu.core_type = #tpu.core_type<tc>, window_params = [{transform_indices = @transform_0, window_bounds = array<i64: 32, 128>}, {transform_indices = @transform_1, window_bounds = array<i64: 32, 128>}, {pipeline_mode = #tpu.pipeline_mode<synchronous>, transform_indices = @transform_2, window_bounds = array<i64: 32, 32>}, {pipeline_mode = #tpu.pipeline_mode<synchronous>, transform_indices = @transform_3, window_bounds = array<i64: 32, 1>}, {pipeline_mode = #tpu.pipeline_mode<synchronous>, transform_indices = @transform_4, window_bounds = array<i64: 32, 32>}, {pipeline_mode = #tpu.pipeline_mode<synchronous>, transform_indices = @transform_5, window_bounds = array<i64: 32, 1>}, {pipeline_mode = #tpu.pipeline_mode<synchronous>, transform_indices = @transform_6, window_bounds = array<i64: 32, 1>}, {pipeline_mode = #tpu.pipeline_mode<synchronous>, transform_indices = @transform_7, window_bounds = array<i64: 1, 1>}, {transform_indices = @transform_8, window_bounds = array<i64: 1, 128>}]} {
    %c0 = arith.constant 0 : index
    %c0_0 = arith.constant 0 : index
    %0 = vector.load %arg1[%c0, %c0_0] : memref<32x128xbf16, #tpu.memory_space<vmem>>, vector<32x128xbf16>
    %c0_1 = arith.constant 0 : index
    %c0_2 = arith.constant 0 : index
    %1 = vector.load %arg2[%c0_1, %c0_2] : memref<32x128xbf16, #tpu.memory_space<vmem>>, vector<32x128xbf16>
    %2 = arith.mulf %0, %1 : vector<32x128xbf16>
    %c0_3 = arith.constant 0 : index
    %c0_4 = arith.constant 0 : index
    %3 = vector.load %arg3[%c0_3, %c0_4] : memref<32x32xbf16, #tpu.memory_space<vmem>>, vector<32x32xbf16>
    %cst = arith.constant dense<0.000000e+00> : vector<32x128xf32>
    %4 = tpu.matmul %3, %2, %cst {dimension_numbers = #tpu.dot_dimension_numbers<[1], [0], [0], [1], [0, 0, 1, 1], [], []>} : vector<32x32xbf16>, vector<32x128xbf16>, vector<32x128xf32> -> vector<32x128xf32>
    %c0_5 = arith.constant 0 : index
    %c0_6 = arith.constant 0 : index
    %5 = vector.load %arg4[%c0_5, %c0_6] : memref<32x1xf32, #tpu.memory_space<vmem>>, vector<32x1xf32>
    %6 = vector.broadcast %5 : vector<32x1xf32> to vector<32x128xf32>
    %7 = arith.addf %4, %6 : vector<32x128xf32>
    %cst_7 = arith.constant 0.000000e+00 : f32
    %8 = vector.broadcast %cst_7 : f32 to vector<32x128xf32>
    %9 = arith.maximumf %7, %8 : vector<32x128xf32>
    %c0_8 = arith.constant 0 : index
    %c0_9 = arith.constant 0 : index
    %10 = vector.load %arg5[%c0_8, %c0_9] : memref<32x32xbf16, #tpu.memory_space<vmem>>, vector<32x32xbf16>
    %11 = arith.truncf %9 : vector<32x128xf32> to vector<32x128xbf16>
    %cst_10 = arith.constant dense<0.000000e+00> : vector<32x128xf32>
    %12 = tpu.matmul %10, %11, %cst_10 {dimension_numbers = #tpu.dot_dimension_numbers<[1], [0], [0], [1], [0, 0, 1, 1], [], []>} : vector<32x32xbf16>, vector<32x128xbf16>, vector<32x128xf32> -> vector<32x128xf32>
    %c0_11 = arith.constant 0 : index
    %c0_12 = arith.constant 0 : index
    %13 = vector.load %arg6[%c0_11, %c0_12] : memref<32x1xf32, #tpu.memory_space<vmem>>, vector<32x1xf32>
    %14 = vector.broadcast %13 : vector<32x1xf32> to vector<32x128xf32>
    %15 = arith.addf %12, %14 : vector<32x128xf32>
    %cst_13 = arith.constant 0.000000e+00 : f32
    %16 = vector.broadcast %cst_13 : f32 to vector<32x128xf32>
    %17 = arith.maximumf %15, %16 : vector<32x128xf32>
    %c0_14 = arith.constant 0 : index
    %c0_15 = arith.constant 0 : index
    %18 = vector.load %arg7[%c0_14, %c0_15] : memref<32x1xf32, #tpu.memory_space<vmem>>, vector<32x1xf32>
    %19 = vector.broadcast %18 : vector<32x1xf32> to vector<32x128xf32>
    %20 = arith.mulf %17, %19 : vector<32x128xf32>
    %cst_16 = arith.constant dense<0.000000e+00> : vector<128xf32>
    %21 = vector.multi_reduction <add>, %20, %cst_16 [0] : vector<32x128xf32> to vector<128xf32>
    %22 = vector.shape_cast %21 : vector<128xf32> to vector<1x128xf32>
    %c0_17 = arith.constant 0 : index
    %c0_18 = arith.constant 0 : index
    %23 = vector.load %arg8[%c0_17, %c0_18] : memref<1x1xf32, #tpu.memory_space<vmem>>, vector<1x1xf32>
    %24 = vector.broadcast %23 : vector<1x1xf32> to vector<1x128xf32>
    %25 = arith.addf %22, %24 : vector<1x128xf32>
    %cst_19 = arith.constant 5.000000e-01 : f32
    %26 = vector.broadcast %cst_19 : f32 to vector<1x128xf32>
    %27 = arith.mulf %26, %25 : vector<1x128xf32>
    %28 = math.tanh %27 : vector<1x128xf32>
    %cst_20 = arith.constant 5.000000e-01 : f32
    %29 = vector.broadcast %cst_20 : f32 to vector<1x128xf32>
    %30 = arith.mulf %29, %28 : vector<1x128xf32>
    %cst_21 = arith.constant 5.000000e-01 : f32
    %31 = vector.broadcast %cst_21 : f32 to vector<1x128xf32>
    %32 = arith.addf %30, %31 : vector<1x128xf32>
    %c0_22 = arith.constant 0 : index
    %c0_23 = arith.constant 0 : index
    %33 = vector.load %arg9[%c0_22, %c0_23] : memref<1x128xf32, #tpu.memory_space<vmem>>, vector<1x128xf32>
    tpu.vector_store %arg9[%c0_22, %c0_23], %32 {strides = array<i32>} : memref<1x128xf32, #tpu.memory_space<vmem>>, vector<1x128xf32>,
    return
  }
  func.func @transform_0(%arg0: i32) -> (i32, i32) {
    %c0_i32 = arith.constant 0 : i32
    %c0_i32_0 = arith.constant 0 : i32
    return %c0_i32, %arg0 : i32, i32
  }
  func.func @transform_1(%arg0: i32) -> (i32, i32) {
    %c0_i32 = arith.constant 0 : i32
    %c0_i32_0 = arith.constant 0 : i32
    return %c0_i32, %arg0 : i32, i32
  }
  func.func @transform_2(%arg0: i32) -> (i32, i32) {
    %c0_i32 = arith.constant 0 : i32
    %c0_i32_0 = arith.constant 0 : i32
    %c0_i32_1 = arith.constant 0 : i32
    return %c0_i32, %c0_i32_0 : i32, i32
  }
  func.func @transform_3(%arg0: i32) -> (i32, i32) {
    %c0_i32 = arith.constant 0 : i32
    %c0_i32_0 = arith.constant 0 : i32
    %c0_i32_1 = arith.constant 0 : i32
    return %c0_i32, %c0_i32_0 : i32, i32
  }
  func.func @transform_4(%arg0: i32) -> (i32, i32) {
    %c0_i32 = arith.constant 0 : i32
    %c0_i32_0 = arith.constant 0 : i32
    %c0_i32_1 = arith.constant 0 : i32
    return %c0_i32, %c0_i32_0 : i32, i32
  }
  func.func @transform_5(%arg0: i32) -> (i32, i32) {
    %c0_i32 = arith.constant 0 : i32
    %c0_i32_0 = arith.constant 0 : i32
    %c0_i32_1 = arith.constant 0 : i32
    return %c0_i32, %c0_i32_0 : i32, i32
  }
  func.func @transform_6(%arg0: i32) -> (i32, i32) {
    %c0_i32 = arith.constant 0 : i32
    %c0_i32_0 = arith.constant 0 : i32
    %c0_i32_1 = arith.constant 0 : i32
    return %c0_i32, %c0_i32_0 : i32, i32
  }
  func.func @transform_7(%arg0: i32) -> (i32, i32) {
    %c0_i32 = arith.constant 0 : i32
    %c0_i32_0 = arith.constant 0 : i32
    %c0_i32_1 = arith.constant 0 : i32
    return %c0_i32, %c0_i32_0 : i32, i32
  }
  func.func @transform_8(%arg0: i32) -> (i32, i32) {
    %c0_i32 = arith.constant 0 : i32
    %c0_i32_0 = arith.constant 0 : i32
    return %c0_i32, %arg0 : i32, i32
  }
}

</mosaic_0001>

<llo_original>
// kernel: link_predictor.1
$region0: #{link_predictor.1}
  #allocation0 [shape = 'u32[]', space=smem, size = 0x4, offset = 0x4, fixed_abs, tag = 'smem constant byte address 0x4 - core index']
  #allocation1 [shape = 'u32[144,128]{1,0:T(1,128)}', space=vmem, size = 0x12000, scoped, tag = 'internal scratch']
  #allocation2 [shape = 'f32[1,1]{1,0:T(1,128)S(1)}', space=vmem, size = 0x200, scoped, tag = 'scoped memory for link_predictor.1']
  %s0 = inlined_call_operand.vmem [shape: bf16[32,256], index: 0, kind: input, shape index: {}]
  %s1 = inlined_call_operand.vmem [shape: bf16[32,256], index: 1, kind: input, shape index: {}]
  %s2 = inlined_call_operand.vmem [shape: bf16[32,32], index: 2, kind: input, shape index: {}]
  %s3 = inlined_call_operand.vmem [shape: f32[32,1], index: 3, kind: input, shape index: {}]
  %s4 = inlined_call_operand.vmem [shape: bf16[32,32], index: 4, kind: input, shape index: {}]
  %s5 = inlined_call_operand.vmem [shape: f32[32,1], index: 5, kind: input, shape index: {}]
  %s6 = inlined_call_operand.vmem [shape: f32[32,1], index: 6, kind: input, shape index: {}]
  %s7 = inlined_call_operand.<no memory space> [shape: f32[1,1], index: 7, kind: input, shape index: {}]
  %s8 = inlined_call_operand.hbm [shape: f32[1,256], index: 8, kind: output, shape index: {}]
  %s9 = sld [smem:[#allocation0]]
  $region147: #{link_predictor.1} parent=0
    _
  %s11 = ssub.s32 1, %s9
  %s12 = scalar_select 0, %s11, %s9
  %v13 = vstv %s7
  %14 = vst [vmem:[#allocation2] sm:$0x1] %v13
  $region1: #{link_predictor.1} parent=0
    #allocation3 [shape = 'u8[16384]{0}', space=vmem, size = 0x4000, scoped, tag = 'input window, operand 0']
    #allocation4 [shape = 'u8[16384]{0}', space=vmem, size = 0x4000, scoped, tag = 'input window, operand 1']
    #allocation5 [shape = 'u8[1024]{0}', space=vmem, size = 0x400, scoped, tag = 'output window, operand 0']
    #allocation6 [shape = 's32[2]{0}', space=sflag, size = 0x8, scoped, tag = 'scoped memory for link_predictor.1']
    %15 = vsyncpa [#allocation6], 0
    %s16 = scalar_lea.sflag [#allocation6], 1
    %17 = vsyncpa %s16, 0
    loop: start=0, step=1, limit=4
    $region2: #{link_predictor.1} parent=1 // loop_pre_header
      _
    $region3: #{link_predictor.1} parent=1 // loop_header
      %s19 = sphi 0, %s23
      %p20 = scmp.ge.s32.totalorder %s19, 4
      %s29 = sphi 0, %s31
      %s32 = sphi 0, %s29
      %s33 = sphi 0, %s32
      %s49 = sphi 0, %s33
      %s55 = sphi 0, %s57
      %s58 = sphi 0, %s55
      %s59 = sphi 0, %s58
      %s75 = sphi 0, %s59
      %s79 = sphi 0, %s79
      %s81 = sphi 0, %s79
      %s82 = sphi 0, %s81
      %s96 = sphi 0, %s82
      %s100 = sphi 0, %s100
      %s102 = sphi 0, %s100
      %s103 = sphi 0, %s102
      %s117 = sphi 0, %s103
      %s121 = sphi 0, %s121
      %s123 = sphi 0, %s121
      %s124 = sphi 0, %s123
      %s138 = sphi 0, %s124
      %s142 = sphi 0, %s142
      %s144 = sphi 0, %s142
      %s145 = sphi 0, %s144
      %s159 = sphi 0, %s145
      %s163 = sphi 0, %s163
      %s165 = sphi 0, %s163
      %s166 = sphi 0, %s165
      %s180 = sphi 0, %s166
      %s184 = sphi 0, %s184
      %s186 = sphi 0, %s184
      %s187 = sphi 0, %s186
      %s201 = sphi 0, %s187
      %s207 = sphi 0, %s209
      %s210 = sphi 0, %s207
      %s211 = sphi 0, %s210
      %s227 = sphi 0, %s211
    $region4: #{link_predictor.1} parent=1 // loop_header_branch
      %22 = sbr.rel (%p20) target = $region8
    $region5: #{link_predictor.1} parent=1 // loop_body
      %s24 = ssub.s32 %s19, 1
      %s25 = ssub.s32 %s19, 2
      %s26 = sadd.s32 %s19, 1
      %s27 = ssub.s32 %s19, %s26
      %p28 = scmp.eq.s32.totalorder %s27, 0
      %s30 = sadd.s32 %s29, 1
      %s31 = scalar_select %p28, %s29, %s30
      %p34 = pneg %p28
      %p35 = scmp.eq.s32.totalorder %s19, 1
      %p36 = por %p34, %p35
      %p37 = scmp.ne.s32.totalorder %s29, %s32
      %p38 = scmp.eq.s32.totalorder %s19, 0
      %p39 = por %p37, %p38
      %p40 = scmp.ne.s32.totalorder %s29, %s32
      %p41 = scmp.eq.s32.totalorder %s24, 1
      %p42 = por %p40, %p41
      %p43 = scmp.ne.s32.totalorder %s32, %s33
      %p44 = scmp.eq.s32.totalorder %s24, 0
      %p45 = por %p43, %p44
      %p46 = scmp.ne.s32.totalorder %s32, %s33
      %p47 = scmp.eq.s32.totalorder %s25, 1
      %p48 = por %p46, %p47
      %p50 = scmp.ne.s32.totalorder %s33, %s49
      %p51 = scmp.eq.s32.totalorder %s25, 0
      %p52 = por %p50, %p51
      %s53 = ssub.s32 %s19, %s26
      %p54 = scmp.eq.s32.totalorder %s53, 0
      %s56 = sadd.s32 %s55, 1
      %s57 = scalar_select %p54, %s55, %s56
      %p60 = pneg %p54
      %p61 = scmp.eq.s32.totalorder %s19, 1
      %p62 = por %p60, %p61
      %p63 = scmp.ne.s32.totalorder %s55, %s58
      %p64 = scmp.eq.s32.totalorder %s19, 0
      %p65 = por %p63, %p64
      %p66 = scmp.ne.s32.totalorder %s55, %s58
      %p67 = scmp.eq.s32.totalorder %s24, 1
      %p68 = por %p66, %p67
      %p69 = scmp.ne.s32.totalorder %s58, %s59
      %p70 = scmp.eq.s32.totalorder %s24, 0
      %p71 = por %p69, %p70
      %p72 = scmp.ne.s32.totalorder %s58, %s59
      %p73 = scmp.eq.s32.totalorder %s25, 1
      %p74 = por %p72, %p73
      %p76 = scmp.ne.s32.totalorder %s59, %s75
      %p77 = scmp.eq.s32.totalorder %s25, 0
      %p78 = por %p76, %p77
      %s80 = sadd.s32 %s79, 1
      %p83 = scmp.eq.s32.totalorder %s19, 1
      %p84 = scmp.ne.s32.totalorder %s79, %s81
      %p85 = scmp.eq.s32.totalorder %s19, 0
      %p86 = por %p84, %p85
      %p87 = scmp.ne.s32.totalorder %s79, %s81
      %p88 = scmp.eq.s32.totalorder %s24, 1
      %p89 = por %p87, %p88
      %p90 = scmp.ne.s32.totalorder %s81, %s82
      %p91 = scmp.eq.s32.totalorder %s24, 0
      %p92 = por %p90, %p91
      %p93 = scmp.ne.s32.totalorder %s81, %s82
      %p94 = scmp.eq.s32.totalorder %s25, 1
      %p95 = por %p93, %p94
      %p97 = scmp.ne.s32.totalorder %s82, %s96
      %p98 = scmp.eq.s32.totalorder %s25, 0
      %p99 = por %p97, %p98
      %s101 = sadd.s32 %s100, 1
      %p104 = scmp.eq.s32.totalorder %s19, 1
      %p105 = scmp.ne.s32.totalorder %s100, %s102
      %p106 = scmp.eq.s32.totalorder %s19, 0
      %p107 = por %p105, %p106
      %p108 = scmp.ne.s32.totalorder %s100, %s102
      %p109 = scmp.eq.s32.totalorder %s24, 1
      %p110 = por %p108, %p109
      %p111 = scmp.ne.s32.totalorder %s102, %s103
      %p112 = scmp.eq.s32.totalorder %s24, 0
      %p113 = por %p111, %p112
      %p114 = scmp.ne.s32.totalorder %s102, %s103
      %p115 = scmp.eq.s32.totalorder %s25, 1
      %p116 = por %p114, %p115
      %p118 = scmp.ne.s32.totalorder %s103, %s117
      %p119 = scmp.eq.s32.totalorder %s25, 0
      %p120 = por %p118, %p119
      %s122 = sadd.s32 %s121, 1
      %p125 = scmp.eq.s32.totalorder %s19, 1
      %p126 = scmp.ne.s32.totalorder %s121, %s123
      %p127 = scmp.eq.s32.totalorder %s19, 0
      %p128 = por %p126, %p127
      %p129 = scmp.ne.s32.totalorder %s121, %s123
      %p130 = scmp.eq.s32.totalorder %s24, 1
      %p131 = por %p129, %p130
      %p132 = scmp.ne.s32.totalorder %s123, %s124
      %p133 = scmp.eq.s32.totalorder %s24, 0
      %p134 = por %p132, %p133
      %p135 = scmp.ne.s32.totalorder %s123, %s124
      %p136 = scmp.eq.s32.totalorder %s25, 1
      %p137 = por %p135, %p136
      %p139 = scmp.ne.s32.totalorder %s124, %s138
      %p140 = scmp.eq.s32.totalorder %s25, 0
      %p141 = por %p139, %p140
      %s143 = sadd.s32 %s142, 1
      %p146 = scmp.eq.s32.totalorder %s19, 1
      %p147 = scmp.ne.s32.totalorder %s142, %s144
      %p148 = scmp.eq.s32.totalorder %s19, 0
      %p149 = por %p147, %p148
      %p150 = scmp.ne.s32.totalorder %s142, %s144
      %p151 = scmp.eq.s32.totalorder %s24, 1
      %p152 = por %p150, %p151
      %p153 = scmp.ne.s32.totalorder %s144, %s145
      %p154 = scmp.eq.s32.totalorder %s24, 0
      %p155 = por %p153, %p154
      %p156 = scmp.ne.s32.totalorder %s144, %s145
      %p157 = scmp.eq.s32.totalorder %s25, 1
      %p158 = por %p156, %p157
      %p160 = scmp.ne.s32.totalorder %s145, %s159
      %p161 = scmp.eq.s32.totalorder %s25, 0
      %p162 = por %p160, %p161
      %s164 = sadd.s32 %s163, 1
      %p167 = scmp.eq.s32.totalorder %s19, 1
      %p168 = scmp.ne.s32.totalorder %s163, %s165
      %p169 = scmp.eq.s32.totalorder %s19, 0
      %p170 = por %p168, %p169
      %p171 = scmp.ne.s32.totalorder %s163, %s165
      %p172 = scmp.eq.s32.totalorder %s24, 1
      %p173 = por %p171, %p172
      %p174 = scmp.ne.s32.totalorder %s165, %s166
      %p175 = scmp.eq.s32.totalorder %s24, 0
      %p176 = por %p174, %p175
      %p177 = scmp.ne.s32.totalorder %s165, %s166
      %p178 = scmp.eq.s32.totalorder %s25, 1
      %p179 = por %p177, %p178
      %p181 = scmp.ne.s32.totalorder %s166, %s180
      %p182 = scmp.eq.s32.totalorder %s25, 0
      %p183 = por %p181, %p182
      %s185 = sadd.s32 %s184, 1
      %p188 = scmp.eq.s32.totalorder %s19, 1
      %p189 = scmp.ne.s32.totalorder %s184, %s186
      %p190 = scmp.eq.s32.totalorder %s19, 0
      %p191 = por %p189, %p190
      %p192 = scmp.ne.s32.totalorder %s184, %s186
      %p193 = scmp.eq.s32.totalorder %s24, 1
      %p194 = por %p192, %p193
      %p195 = scmp.ne.s32.totalorder %s186, %s187
      %p196 = scmp.eq.s32.totalorder %s24, 0
      %p197 = por %p195, %p196
      %p198 = scmp.ne.s32.totalorder %s186, %s187
      %p199 = scmp.eq.s32.totalorder %s25, 1
      %p200 = por %p198, %p199
      %p202 = scmp.ne.s32.totalorder %s187, %s201
      %p203 = scmp.eq.s32.totalorder %s25, 0
      %p204 = por %p202, %p203
      %s205 = ssub.s32 %s19, %s26
      %p206 = scmp.eq.s32.totalorder %s205, 0
      %s208 = sadd.s32 %s207, 1
      %s209 = scalar_select %p206, %s207, %s208
      %p212 = pneg %p206
      %p213 = scmp.eq.s32.totalorder %s19, 1
      %p214 = por %p212, %p213
      %p215 = scmp.ne.s32.totalorder %s207, %s210
      %p216 = scmp.eq.s32.totalorder %s19, 0
      %p217 = por %p215, %p216
      %p218 = scmp.ne.s32.totalorder %s207, %s210
      %p219 = scmp.eq.s32.totalorder %s24, 1
      %p220 = por %p218, %p219
      %p221 = scmp.ne.s32.totalorder %s210, %s211
      %p222 = scmp.eq.s32.totalorder %s24, 0
      %p223 = por %p221, %p222
      %p224 = scmp.ne.s32.totalorder %s210, %s211
      %p225 = scmp.eq.s32.totalorder %s25, 1
      %p226 = por %p224, %p225
      %p228 = scmp.ne.s32.totalorder %s211, %s227
      %p229 = scmp.eq.s32.totalorder %s25, 0
      %p230 = por %p228, %p229
      %p231 = scmp.le.s32.totalorder 1, %s19
      %p232 = scmp.lt.s32.totalorder %s19, 3
      %p233 = pnand %p231, %p232
      %p234 = pneg %p233
      // Predicated region
      $region9: #{link_predictor.1} parent=5 // pred_check
        _
      $region10: #{link_predictor.1} parent=5 // pred_check_branch
        %236 = sbr.rel (%p233) target = $region12
      $region11: #{link_predictor.1} parent=5 // pred_region
        %s237 = ssub.s32 %s19, 1
        // Predicated region
        $region13: #{link_predictor.1} parent=11 // pred_check
          %p238 = pneg %p92
        $region14: #{link_predictor.1} parent=11 // pred_check_branch
          %240 = sbr.rel (%p238) target = $region16
        $region15: #{link_predictor.1} parent=11 // pred_region
          _
        $region16: #{link_predictor.1} parent=11 // pred_fallthru
          _
        // Predicated region
        $region17: #{link_predictor.1} parent=11 // pred_check
          %p241 = pneg %p113
        $region18: #{link_predictor.1} parent=11 // pred_check_branch
          %243 = sbr.rel (%p241) target = $region20
        $region19: #{link_predictor.1} parent=11 // pred_region
          _
        $region20: #{link_predictor.1} parent=11 // pred_fallthru
          _
        // Predicated region
        $region21: #{link_predictor.1} parent=11 // pred_check
          %p244 = pneg %p134
        $region22: #{link_predictor.1} parent=11 // pred_check_branch
          %246 = sbr.rel (%p244) target = $region24
        $region23: #{link_predictor.1} parent=11 // pred_region
          _
        $region24: #{link_predictor.1} parent=11 // pred_fallthru
          _
        // Predicated region
        $region25: #{link_predictor.1} parent=11 // pred_check
          %p247 = pneg %p155
        $region26: #{link_predictor.1} parent=11 // pred_check_branch
          %249 = sbr.rel (%p247) target = $region28
        $region27: #{link_predictor.1} parent=11 // pred_region
          _
        $region28: #{link_predictor.1} parent=11 // pred_fallthru
          _
        // Predicated region
        $region29: #{link_predictor.1} parent=11 // pred_check
          %p250 = pneg %p176
        $region30: #{link_predictor.1} parent=11 // pred_check_branch
          %252 = sbr.rel (%p250) target = $region32
        $region31: #{link_predictor.1} parent=11 // pred_region
          _
        $region32: #{link_predictor.1} parent=11 // pred_fallthru
          _
        // Predicated region
        $region33: #{link_predictor.1} parent=11 // pred_check
          %p253 = pneg %p197
        $region34: #{link_predictor.1} parent=11 // pred_check_branch
          %255 = sbr.rel (%p253) target = $region36
        $region35: #{link_predictor.1} parent=11 // pred_region
          _
        $region36: #{link_predictor.1} parent=11 // pred_fallthru
          _
      $region12: #{link_predictor.1} parent=5 // pred_fallthru
        _
      %p256 = scmp.lt.s32.totalorder %s19, 2
      // Predicated region
      $region37: #{link_predictor.1} parent=5 // pred_check
        %p257 = pneg %p256
      $region38: #{link_predictor.1} parent=5 // pred_check_branch
        %259 = sbr.rel (%p257) target = $region40
      $region39: #{link_predictor.1} parent=5 // pred_region
        // Predicated region
        $region41: #{link_predictor.1} parent=39 // pred_check
          %p260 = pneg %p39
        $region42: #{link_predictor.1} parent=39 // pred_check_branch
          %262 = sbr.rel (%p260) target = $region44
        $region43: #{link_predictor.1} parent=39 // pred_region
          %s263 = sand.u32 %s29, 1
          %s264 = sand.u32 %s29, 1
          %s265 = smul.addr %s264, 16
          %s266 = scalar_lea.vmem [#allocation3], %s265
          %s267 = smul.addr %s19, 4
          %s268 = scalar_lea.vmem %s0, %s267
          // Predicated region
          $region45: #{link_predictor.1} parent=43 // pred_check
            _
          $region46: #{link_predictor.1} parent=43 // pred_check_branch
            %270 = sbr.rel (0) target = $region48
          $region47: #{link_predictor.1} parent=43 // pred_region
            // Predicated region
            $region49: #{link_predictor.1} parent=47 // pred_check
              _
            $region50: #{link_predictor.1} parent=47 // pred_check_branch
              %272 = sbr.rel target = $region52
            $region51: #{link_predictor.1} parent=47 // pred_region
              // Predicated region
              $region64: #{link_predictor.1} parent=51 // pred_check
                _
              $region65: #{link_predictor.1} parent=51 // pred_check_branch
                %293 = sbr.rel (0) target = $region67
              $region66: #{link_predictor.1} parent=51 // pred_region
                loop: start=0, step=1, limit=1
                $region68: #{link_predictor.1} parent=66 // loop_pre_header
                  _
                $region69: #{link_predictor.1} parent=66 // loop_header
                  %s295 = sphi 0, %s299
                  %p296 = scmp.ge.s32.totalorder %s295, 1
                  %s300 = sphi %s268, %s268
                  %s301 = sphi %s266, %s266
                $region70: #{link_predictor.1} parent=66 // loop_header_branch
                  %298 = sbr.rel (%p296) target = $region74
                $region71: #{link_predictor.1} parent=66 // loop_body
                  _
                $region72: #{link_predictor.1} parent=66 // loop_footer
                  %s299 = sadd.s32 1, %s295
                $region73: #{link_predictor.1} parent=66 // loop_footer_branch
                  %294 = sbr.rel target = $region69
                $region74: #{link_predictor.1} parent=66 // loop_exit
                  _
                loop: start=0, step=1, limit=1
                $region75: #{link_predictor.1} parent=66 // loop_pre_header
                  _
                $region76: #{link_predictor.1} parent=66 // loop_header
                  %s304 = sphi 0, %s308
                  %p305 = scmp.ge.s32.totalorder %s304, 1
                  %s309 = sphi %s268, %s268
                  %s310 = sphi %s266, %s266
                $region77: #{link_predictor.1} parent=66 // loop_header_branch
                  %307 = sbr.rel (%p305) target = $region81
                $region78: #{link_predictor.1} parent=66 // loop_body
                  %v311 = vld [vmem:[%s309] sm:$0xf]
                  %312 = vst [vmem:[%s310] sm:$0xf] %v311
                  %v313 = vld [vmem:[%s309 + $0x8] sm:$0xf]
                  %314 = vst [vmem:[%s310 + $0x4] sm:$0xf] %v313
                  %v315 = vld [vmem:[%s309 + $0x10] sm:$0xf]
                  %316 = vst [vmem:[%s310 + $0x8] sm:$0xf] %v315
                  %v317 = vld [vmem:[%s309 + $0x18] sm:$0xf]
                  %318 = vst [vmem:[%s310 + $0xc] sm:$0xf] %v317
                $region79: #{link_predictor.1} parent=66 // loop_footer
                  %s308 = sadd.s32 1, %s304
                $region80: #{link_predictor.1} parent=66 // loop_footer_branch
                  %303 = sbr.rel target = $region76
                $region81: #{link_predictor.1} parent=66 // loop_exit
                  _
              $region67: #{link_predictor.1} parent=51 // pred_fallthru
                _
            $region52: #{link_predictor.1} parent=47 // pred_fallthru
              _
            // Predicated region
            $region53: #{link_predictor.1} parent=47 // pred_check
              _
            $region54: #{link_predictor.1} parent=47 // pred_check_branch
              %274 = sbr.rel (0) target = $region56
            $region55: #{link_predictor.1} parent=47 // pred_region
              loop: start=0, step=1, limit=1
              $region57: #{link_predictor.1} parent=55 // loop_pre_header
                _
              $region58: #{link_predictor.1} parent=55 // loop_header
                %s277 = sphi 0, %s281
                %p278 = scmp.ge.s32.totalorder %s277, 1
                %s282 = sphi %s268, %s268
                %s283 = sphi %s266, %s266
              $region59: #{link_predictor.1} parent=55 // loop_header_branch
                %280 = sbr.rel (%p278) target = $region63
              $region60: #{link_predictor.1} parent=55 // loop_body
                %v284 = vld [vmem:[%s282] sm:$0xf]
                %285 = vst [vmem:[%s283] sm:$0xf] %v284
                %v286 = vld [vmem:[%s282 + $0x8] sm:$0xf]
                %287 = vst [vmem:[%s283 + $0x4] sm:$0xf] %v286
                %v288 = vld [vmem:[%s282 + $0x10] sm:$0xf]
                %289 = vst [vmem:[%s283 + $0x8] sm:$0xf] %v288
                %v290 = vld [vmem:[%s282 + $0x18] sm:$0xf]
                %291 = vst [vmem:[%s283 + $0xc] sm:$0xf] %v290
              $region61: #{link_predictor.1} parent=55 // loop_footer
                %s281 = sadd.s32 1, %s277
              $region62: #{link_predictor.1} parent=55 // loop_footer_branch
                %276 = sbr.rel target = $region58
              $region63: #{link_predictor.1} parent=55 // loop_exit
                _
            $region56: #{link_predictor.1} parent=47 // pred_fallthru
              _
          $region48: #{link_predictor.1} parent=43 // pred_fallthru
            _
          %319 = vnop
        $region44: #{link_predictor.1} parent=39 // pred_fallthru
          _
        // Predicated region
        $region82: #{link_predictor.1} parent=39 // pred_check
          %p320 = pneg %p65
        $region83: #{link_predictor.1} parent=39 // pred_check_branch
          %322 = sbr.rel (%p320) target = $region85
        $region84: #{link_predictor.1} parent=39 // pred_region
          %s323 = sand.u32 %s55, 1
          %s324 = sand.u32 %s55, 1
          %s325 = smul.addr %s324, 16
          %s326 = scalar_lea.vmem [#allocation4], %s325
          %s327 = smul.addr %s19, 4
          %s328 = scalar_lea.vmem %s1, %s327
          // Predicated region
          $region86: #{link_predictor.1} parent=84 // pred_check
            _
          $region87: #{link_predictor.1} parent=84 // pred_check_branch
            %330 = sbr.rel (0) target = $region89
          $region88: #{link_predictor.1} parent=84 // pred_region
            // Predicated region
            $region90: #{link_predictor.1} parent=88 // pred_check
              _
            $region91: #{link_predictor.1} parent=88 // pred_check_branch
              %332 = sbr.rel target = $region93
            $region92: #{link_predictor.1} parent=88 // pred_region
              // Predicated region
              $region105: #{link_predictor.1} parent=92 // pred_check
                _
              $region106: #{link_predictor.1} parent=92 // pred_check_branch
                %353 = sbr.rel (0) target = $region108
              $region107: #{link_predictor.1} parent=92 // pred_region
                loop: start=0, step=1, limit=1
                $region109: #{link_predictor.1} parent=107 // loop_pre_header
                  _
                $region110: #{link_predictor.1} parent=107 // loop_header
                  %s355 = sphi 0, %s359
                  %p356 = scmp.ge.s32.totalorder %s355, 1
                  %s360 = sphi %s328, %s328
                  %s361 = sphi %s326, %s326
                $region111: #{link_predictor.1} parent=107 // loop_header_branch
                  %358 = sbr.rel (%p356) target = $region115
                $region112: #{link_predictor.1} parent=107 // loop_body
                  _
                $region113: #{link_predictor.1} parent=107 // loop_footer
                  %s359 = sadd.s32 1, %s355
                $region114: #{link_predictor.1} parent=107 // loop_footer_branch
                  %354 = sbr.rel target = $region110
                $region115: #{link_predictor.1} parent=107 // loop_exit
                  _
                loop: start=0, step=1, limit=1
                $region116: #{link_predictor.1} parent=107 // loop_pre_header
                  _
                $region117: #{link_predictor.1} parent=107 // loop_header
                  %s364 = sphi 0, %s368
                  %p365 = scmp.ge.s32.totalorder %s364, 1
                  %s369 = sphi %s328, %s328
                  %s370 = sphi %s326, %s326
                $region118: #{link_predictor.1} parent=107 // loop_header_branch
                  %367 = sbr.rel (%p365) target = $region122
                $region119: #{link_predictor.1} parent=107 // loop_body
                  %v371 = vld [vmem:[%s369] sm:$0xf]
                  %372 = vst [vmem:[%s370] sm:$0xf] %v371
                  %v373 = vld [vmem:[%s369 + $0x8] sm:$0xf]
                  %374 = vst [vmem:[%s370 + $0x4] sm:$0xf] %v373
                  %v375 = vld [vmem:[%s369 + $0x10] sm:$0xf]
                  %376 = vst [vmem:[%s370 + $0x8] sm:$0xf] %v375
                  %v377 = vld [vmem:[%s369 + $0x18] sm:$0xf]
                  %378 = vst [vmem:[%s370 + $0xc] sm:$0xf] %v377
                $region120: #{link_predictor.1} parent=107 // loop_footer
                  %s368 = sadd.s32 1, %s364
                $region121: #{link_predictor.1} parent=107 // loop_footer_branch
                  %363 = sbr.rel target = $region117
                $region122: #{link_predictor.1} parent=107 // loop_exit
                  _
              $region108: #{link_predictor.1} parent=92 // pred_fallthru
                _
            $region93: #{link_predictor.1} parent=88 // pred_fallthru
              _
            // Predicated region
            $region94: #{link_predictor.1} parent=88 // pred_check
              _
            $region95: #{link_predictor.1} parent=88 // pred_check_branch
              %334 = sbr.rel (0) target = $region97
            $region96: #{link_predictor.1} parent=88 // pred_region
              loop: start=0, step=1, limit=1
              $region98: #{link_predictor.1} parent=96 // loop_pre_header
                _
              $region99: #{link_predictor.1} parent=96 // loop_header
                %s337 = sphi 0, %s341
                %p338 = scmp.ge.s32.totalorder %s337, 1
                %s342 = sphi %s328, %s328
                %s343 = sphi %s326, %s326
              $region100: #{link_predictor.1} parent=96 // loop_header_branch
                %340 = sbr.rel (%p338) target = $region104
              $region101: #{link_predictor.1} parent=96 // loop_body
                %v344 = vld [vmem:[%s342] sm:$0xf]
                %345 = vst [vmem:[%s343] sm:$0xf] %v344
                %v346 = vld [vmem:[%s342 + $0x8] sm:$0xf]
                %347 = vst [vmem:[%s343 + $0x4] sm:$0xf] %v346
                %v348 = vld [vmem:[%s342 + $0x10] sm:$0xf]
                %349 = vst [vmem:[%s343 + $0x8] sm:$0xf] %v348
                %v350 = vld [vmem:[%s342 + $0x18] sm:$0xf]
                %351 = vst [vmem:[%s343 + $0xc] sm:$0xf] %v350
              $region102: #{link_predictor.1} parent=96 // loop_footer
                %s341 = sadd.s32 1, %s337
              $region103: #{link_predictor.1} parent=96 // loop_footer_branch
                %336 = sbr.rel target = $region99
              $region104: #{link_predictor.1} parent=96 // loop_exit
                _
            $region97: #{link_predictor.1} parent=88 // pred_fallthru
              _
          $region89: #{link_predictor.1} parent=84 // pred_fallthru
            _
          %379 = vnop
        $region85: #{link_predictor.1} parent=39 // pred_fallthru
          _
      $region40: #{link_predictor.1} parent=5 // pred_fallthru
        _
      %p380 = scmp.le.s32.totalorder 1, %s19
      %p381 = scmp.lt.s32.totalorder %s19, 3
      %p382 = pnand %p380, %p381
      %p383 = pneg %p382
      // Predicated region
      $region123: #{link_predictor.1} parent=5 // pred_check
        _
      $region124: #{link_predictor.1} parent=5 // pred_check_branch
        %385 = sbr.rel (%p382) target = $region126
      $region125: #{link_predictor.1} parent=5 // pred_region
        %s386 = ssub.s32 %s19, 1
        %s387 = sand.u32 %s32, 1
        %s388 = sand.u32 %s32, 1
        %s389 = smul.addr %s388, 16
        %s390 = scalar_lea.vmem [#allocation3], %s389
        // Predicated region
        $region127: #{link_predictor.1} parent=125 // pred_check
          %p391 = pneg %p45
        $region128: #{link_predictor.1} parent=125 // pred_check_branch
          %393 = sbr.rel (%p391) target = $region130
        $region129: #{link_predictor.1} parent=125 // pred_region
          _
        $region130: #{link_predictor.1} parent=125 // pred_fallthru
          _
        %s394 = sand.u32 %s58, 1
        %s395 = sand.u32 %s58, 1
        %s396 = smul.addr %s395, 16
        %s397 = scalar_lea.vmem [#allocation4], %s396
        // Predicated region
        $region131: #{link_predictor.1} parent=125 // pred_check
          %p398 = pneg %p71
        $region132: #{link_predictor.1} parent=125 // pred_check_branch
          %400 = sbr.rel (%p398) target = $region134
        $region133: #{link_predictor.1} parent=125 // pred_region
          _
        $region134: #{link_predictor.1} parent=125 // pred_fallthru
          _
        %s401 = sand.u32 %s32, 1
        %s402 = sand.u32 %s32, 1
        %s403 = smul.addr %s402, 16
        %s404 = scalar_lea.vmem [#allocation3], %s403
        %p405 = pneg %p45
        %p406 = pneg %p42
        %s407 = sand.u32 %s58, 1
        %s408 = sand.u32 %s58, 1
        %s409 = smul.addr %s408, 16
        %s410 = scalar_lea.vmem [#allocation4], %s409
        %p411 = pneg %p71
        %p412 = pneg %p68
        %p413 = pneg %p92
        %p414 = pneg %p89
        %p415 = pneg %p113
        %p416 = pneg %p110
        %p417 = pneg %p134
        %p418 = pneg %p131
        %p419 = pneg %p155
        %p420 = pneg %p152
        %p421 = pneg %p176
        %p422 = pneg %p173
        %p423 = pneg %p197
        %p424 = pneg %p194
        %p425 = pneg %p223
        %p426 = pneg %p220
        %s427 = sand.u32 %s210, 1
        %s428 = scalar_lea.sflag [#allocation6], %s427
        %s429 = sand.u32 %s210, 1
        %s430 = scalar_lea.vmem [#allocation5], %s429
        %v432 = vld [vmem:[%s390] sm:$0xf]
        %v433 = vld [vmem:[%s390 + $0x4] sm:$0xf]
        %v434 = vld [vmem:[%s390 + $0x8] sm:$0xf]
        %v435 = vld [vmem:[%s390 + $0xc] sm:$0xf]
        %v436 = vld [vmem:[%s397] sm:$0xf]
        %v437 = vld [vmem:[%s397 + $0x4] sm:$0xf]
        %v438 = vld [vmem:[%s397 + $0x8] sm:$0xf]
        %v439 = vld [vmem:[%s397 + $0xc] sm:$0xf]
        %v440 = vmul.bf16 %v432, %v436
        %v441 = vmul.bf16 %v433, %v437
        %v442 = vmul.bf16 %v434, %v438
        %v443 = vmul.bf16 %v435, %v439
        %v444 = vld [vmem:[%s2] sm:$0xf]
        %v445 = vld [vmem:[%s2 + $0x4] sm:$0xf]
        %v446 = vld [vmem:[%s2 + $0x8] sm:$0xf]
        %v447 = vld [vmem:[%s2 + $0xc] sm:$0xf]
        %v448 = vld [vmem:[%s3] sm:$0xff]
        %v449 = vld [vmem:[%s3 + $0x8] sm:$0xff]
        %v450 = vld [vmem:[%s3 + $0x10] sm:$0xff]
        %v451 = vld [vmem:[%s3 + $0x18] sm:$0xff]
        %453 = vset.pattern.permute.xlu0 0
        %454 = vperm.xlu0 %453, %v448
        %v455 = vpop.permute.xlu0 %454
        %458 = vset.pattern.permute.xlu0 0
        %459 = vperm.xlu0 %458, %v449
        %v460 = vpop.permute.xlu0 %459
        %463 = vset.pattern.permute.xlu0 0
        %464 = vperm.xlu0 %463, %v450
        %v465 = vpop.permute.xlu0 %464
        %468 = vset.pattern.permute.xlu0 0
        %469 = vperm.xlu0 %468, %v451
        %v470 = vpop.permute.xlu0 %469
        %v476 = vunpack.c.l.b16 %v444
        %v477 = vunpack.c.l.b16 %v445
        %v478 = vunpack.c.l.b16 %v446
        %v479 = vunpack.c.l.b16 %v447
        %v480 = vpack.c.b16 %v477, %v476
        %v481 = vpack.c.b16 %v479, %v478
        %v486 = vunpack.c.l.b16 %v440
        %v487 = vunpack.c.l.b16 %v441
        %v488 = vunpack.c.l.b16 %v442
        %v489 = vunpack.c.l.b16 %v443
        %v490 = vpack.c.b16 %v487, %v486
        %v491 = vpack.c.b16 %v489, %v488
        %vm494 = vcmask 261120
        %v496 = vsel %vm494, %v480, 0
        %v499 = vsel %vm494, %v481, 0
        %501 = vmatprep.subr.bf16.mxu0 0
        %502 = vmatpush1.bf16.msra.mxu0 %v490
        %503 = vmatprep.subr.bf16.mxu0 0
        %504 = vmatpush1.bf16.msra.mxu0 %v491
        %505 = vmatprep.subr.bf16.mxu0 0
        %506 = vmatpush1.bf16.msra.mxu0 0
        %507 = vmatprep.subr.bf16.mxu0 0
        %508 = vmatpush1.bf16.msra.mxu0 0
        %509 = vmatprep.subr.bf16.mxu0 0
        %510 = vmatpush1.bf16.msra.mxu0 0
        %511 = vmatprep.subr.bf16.mxu0 0
        %512 = vmatpush1.bf16.msra.mxu0 0
        %513 = vmatprep.subr.bf16.mxu0 0
        %514 = vmatpush1.bf16.msra.mxu0 0
        %515 = vmatprep.subr.bf16.mxu0 0
        %516 = vmatpush1.bf16.msra.mxu0 0
        %517 = vmatprep.subr.bf16.mxu0 0
        %518 = vmatpush1.bf16.msra.mxu0 0
        %519 = vmatprep.subr.bf16.mxu0 0
        %520 = vmatpush1.bf16.msra.mxu0 0
        %521 = vmatprep.subr.bf16.mxu0 0
        %522 = vmatpush1.bf16.msra.mxu0 0
        %523 = vmatprep.subr.bf16.mxu0 0
        %524 = vmatpush1.bf16.msra.mxu0 0
        %525 = vmatprep.subr.bf16.mxu0 0
        %526 = vmatpush1.bf16.msra.mxu0 0
        %527 = vmatprep.subr.bf16.mxu0 0
        %528 = vmatpush1.bf16.msra.mxu0 0
        %529 = vmatprep.subr.bf16.mxu0 0
        %530 = vmatpush1.bf16.msra.mxu0 0
        %531 = vmatprep.subr.bf16.mxu0 0
        %532 = vmatpush1.bf16.msra.mxu0 0
        %533 = vmatprep.mubr.bf16.mxu0 0
        %534 = vmatmul.mubr.bf16.gmra.mrb[0].mxu0 %v496
        %v535 = vpop.f32.mrb[0].mxu0
        %v536 = vadd.f32 %v455, %v535
        %v537 = vpop.f32.mrb[0].mxu0
        %v538 = vpop.f32.mrb[0].mxu0
        %v539 = vadd.f32 %v460, %v538
        %v540 = vpop.f32.mrb[0].mxu0
        %541 = vmatprep.mubr.bf16.mxu0 0
        %542 = vmatmul.mubr.bf16.gmra.mrb[0].mxu0 %v499
        %v543 = vpop.f32.mrb[0].mxu0
        %v544 = vadd.f32 %v465, %v543
        %v545 = vpop.f32.mrb[0].mxu0
        %v546 = vpop.f32.mrb[0].mxu0
        %v547 = vadd.f32 %v470, %v546
        %v548 = vpop.f32.mrb[0].mxu0
        %549 = vdwg.mxu0
        %v550 = vmax.f32 %v536, 0.0
        %v551 = vmax.f32 %v539, 0.0
        %v552 = vmax.f32 %v544, 0.0
        %v553 = vmax.f32 %v547, 0.0
        %v554 = vld [vmem:[%s4] sm:$0xf]
        %v555 = vld [vmem:[%s4 + $0x4] sm:$0xf]
        %v556 = vld [vmem:[%s4 + $0x8] sm:$0xf]
        %v557 = vld [vmem:[%s4 + $0xc] sm:$0xf]
        %v558 = vpack.c.bf16 %v551, %v550
        %v559 = vpack.c.bf16 %v553, %v552
        %v560 = vld [vmem:[%s5] sm:$0xff]
        %v561 = vld [vmem:[%s5 + $0x8] sm:$0xff]
        %v562 = vld [vmem:[%s5 + $0x10] sm:$0xff]
        %v563 = vld [vmem:[%s5 + $0x18] sm:$0xff]
        %565 = vset.pattern.permute.xlu0 0
        %566 = vperm.xlu0 %565, %v560
        %v567 = vpop.permute.xlu0 %566
        %570 = vset.pattern.permute.xlu0 0
        %571 = vperm.xlu0 %570, %v561
        %v572 = vpop.permute.xlu0 %571
        %575 = vset.pattern.permute.xlu0 0
        %576 = vperm.xlu0 %575, %v562
        %v577 = vpop.permute.xlu0 %576
        %580 = vset.pattern.permute.xlu0 0
        %581 = vperm.xlu0 %580, %v563
        %v582 = vpop.permute.xlu0 %581
        %v588 = vunpack.c.l.b16 %v554
        %v589 = vunpack.c.l.b16 %v555
        %v590 = vunpack.c.l.b16 %v556
        %v591 = vunpack.c.l.b16 %v557
        %v592 = vpack.c.b16 %v589, %v588
        %v593 = vpack.c.b16 %v591, %v590
        %v595 = vsel %vm494, %v592, 0
        %v598 = vsel %vm494, %v593, 0
        %600 = vmatprep.subr.bf16.mxu0 0
        %601 = vmatpush1.bf16.msra.mxu0 %v558
        %602 = vmatprep.subr.bf16.mxu0 0
        %603 = vmatpush1.bf16.msra.mxu0 %v559
        %604 = vmatprep.subr.bf16.mxu0 0
        %605 = vmatpush1.bf16.msra.mxu0 0
        %606 = vmatprep.subr.bf16.mxu0 0
        %607 = vmatpush1.bf16.msra.mxu0 0
        %608 = vmatprep.subr.bf16.mxu0 0
        %609 = vmatpush1.bf16.msra.mxu0 0
        %610 = vmatprep.subr.bf16.mxu0 0
        %611 = vmatpush1.bf16.msra.mxu0 0
        %612 = vmatprep.subr.bf16.mxu0 0
        %613 = vmatpush1.bf16.msra.mxu0 0
        %614 = vmatprep.subr.bf16.mxu0 0
        %615 = vmatpush1.bf16.msra.mxu0 0
        %616 = vmatprep.subr.bf16.mxu0 0
        %617 = vmatpush1.bf16.msra.mxu0 0
        %618 = vmatprep.subr.bf16.mxu0 0
        %619 = vmatpush1.bf16.msra.mxu0 0
        %620 = vmatprep.subr.bf16.mxu0 0
        %621 = vmatpush1.bf16.msra.mxu0 0
        %622 = vmatprep.subr.bf16.mxu0 0
        %623 = vmatpush1.bf16.msra.mxu0 0
        %624 = vmatprep.subr.bf16.mxu0 0
        %625 = vmatpush1.bf16.msra.mxu0 0
        %626 = vmatprep.subr.bf16.mxu0 0
        %627 = vmatpush1.bf16.msra.mxu0 0
        %628 = vmatprep.subr.bf16.mxu0 0
        %629 = vmatpush1.bf16.msra.mxu0 0
        %630 = vmatprep.subr.bf16.mxu0 0
        %631 = vmatpush1.bf16.msra.mxu0 0
        %632 = vmatprep.mubr.bf16.mxu0 0
        %633 = vmatmul.mubr.bf16.gmra.mrb[0].mxu0 %v595
        %v634 = vpop.f32.mrb[0].mxu0
        %v635 = vadd.f32 %v567, %v634
        %v636 = vpop.f32.mrb[0].mxu0
        %v637 = vpop.f32.mrb[0].mxu0
        %v638 = vadd.f32 %v572, %v637
        %v639 = vpop.f32.mrb[0].mxu0
        %640 = vmatprep.mubr.bf16.mxu0 0
        %641 = vmatmul.mubr.bf16.gmra.mrb[0].mxu0 %v598
        %v642 = vpop.f32.mrb[0].mxu0
        %v643 = vadd.f32 %v577, %v642
        %v644 = vpop.f32.mrb[0].mxu0
        %v645 = vpop.f32.mrb[0].mxu0
        %v646 = vadd.f32 %v582, %v645
        %v647 = vpop.f32.mrb[0].mxu0
        %648 = vdwg.mxu0
        %v649 = vmax.f32 %v635, 0.0
        %v650 = vmax.f32 %v638, 0.0
        %v651 = vmax.f32 %v643, 0.0
        %v652 = vmax.f32 %v646, 0.0
        %v653 = vld [vmem:[%s6] sm:$0xff]
        %v654 = vld [vmem:[%s6 + $0x8] sm:$0xff]
        %v655 = vld [vmem:[%s6 + $0x10] sm:$0xff]
        %v656 = vld [vmem:[%s6 + $0x18] sm:$0xff]
        %658 = vset.pattern.permute.xlu0 0
        %659 = vperm.xlu0 %658, %v653
        %v660 = vpop.permute.xlu0 %659
        %663 = vset.pattern.permute.xlu0 0
        %664 = vperm.xlu0 %663, %v654
        %v665 = vpop.permute.xlu0 %664
        %668 = vset.pattern.permute.xlu0 0
        %669 = vperm.xlu0 %668, %v655
        %v670 = vpop.permute.xlu0 %669
        %673 = vset.pattern.permute.xlu0 0
        %674 = vperm.xlu0 %673, %v656
        %v675 = vpop.permute.xlu0 %674
        %v677 = vmul.f32 %v649, %v660
        %v678 = vmul.f32 %v650, %v665
        %v679 = vmul.f32 %v651, %v670
        %v680 = vmul.f32 %v652, %v675
        %v681 = vadd.f32 %v677, %v678
        %v682 = vadd.f32 %v681, %v679
        %v683 = vadd.f32 %v682, %v680
        %v684 = vrot.slane %v683, 4
        %v685 = vadd.f32 %v683, %v684
        %v686 = vrot.slane %v685, 2
        %v687 = vadd.f32 %v685, %v686
        %v688 = vrot.slane %v687, 1
        %v689 = vadd.f32 %v687, %v688
        %v690 = vld [vmem:[#allocation2] sm:$0x1]
        %692 = vset.pattern.permute.xlu0 0
        %693 = vperm.xlu0 %692, %v690
        %v694 = vpop.permute.xlu0 %693
        %v696 = vlaneseq
        %v697 = vshrl.u32 %v696, 7
        %v698 = vsub.s32 0, %v697
        %v699 = vrot.slane %v694, %v698
        %v700 = vadd.f32 %v689, %v699
        %v701 = vmul.f32 %v700, 0.5
        %v702 = vtanh.pop %v701
        %v703 = vmul.f32 %v702, 0.5
        %v704 = vadd.f32 %v703, 0.5
        %705 = vst [vmem:[%s430] sm:$0x1] %v704
        %s706 = sand.u32 %s210, 1
        %s707 = scalar_lea.sflag [#allocation6], %s706
        %s708 = sand.u32 %s210, 1
        %s709 = scalar_lea.vmem [#allocation5], %s708
        // Predicated region
        $region135: #{link_predictor.1} parent=125 // pred_check
          %p710 = pneg %p220
        $region136: #{link_predictor.1} parent=125 // pred_check_branch
          %712 = sbr.rel (%p710) target = $region138
        $region137: #{link_predictor.1} parent=125 // pred_region
          %s714 = ssub.s32 16, 16
          %715 = vsyncadd %s707, %s714
          %s716 = smul.addr %s24, 16
          %s717 = scalar_lea.hbm %s8, %s716
          %s719 = sshll.u32 %s709, 4
          %s720 = int_to_ptr.vmem [resolvable:$true] %s719
          %722 = dma.vmem_to_hbm [thread:$0]  %s720, 16, %s717, %s707
        $region138: #{link_predictor.1} parent=125 // pred_fallthru
          _
      $region126: #{link_predictor.1} parent=5 // pred_fallthru
        _
      %p723 = scmp.le.s32.totalorder 2, %s19
      // Predicated region
      $region139: #{link_predictor.1} parent=5 // pred_check
        %p724 = pneg %p723
      $region140: #{link_predictor.1} parent=5 // pred_check_branch
        %726 = sbr.rel (%p724) target = $region142
      $region141: #{link_predictor.1} parent=5 // pred_region
        %s727 = ssub.s32 %s19, 2
        // Predicated region
        $region143: #{link_predictor.1} parent=141 // pred_check
          %p728 = pneg %p226
        $region144: #{link_predictor.1} parent=141 // pred_check_branch
          %730 = sbr.rel (%p728) target = $region146
        $region145: #{link_predictor.1} parent=141 // pred_region
          %s731 = sand.u32 %s211, 1
          %s732 = scalar_lea.sflag [#allocation6], %s731
          %s733 = sand.u32 %s211, 1
          %s734 = scalar_lea.vmem [#allocation5], %s733
          %735 = dma.done %s732, 16
        $region146: #{link_predictor.1} parent=141 // pred_fallthru
          _
      $region142: #{link_predictor.1} parent=5 // pred_fallthru
        _
    $region6: #{link_predictor.1} parent=1 // loop_footer
      %s23 = sadd.s32 1, %s19
    $region7: #{link_predictor.1} parent=1 // loop_footer_branch
      %18 = sbr.rel target = $region3
    $region8: #{link_predictor.1} parent=1 // loop_exit
      _
    %736 = vsyncpa [#allocation6], 1
    %s737 = scalar_lea.sflag [#allocation6], 1
    %738 = vsyncpa %s737, 1

</llo_original>
